<compile_context>
chip_gen: v5e
topology: v5e:2x2
jax: 0.10.0
libtpu: 0.0.40
codegen_flags: <defaults>
</compile_context>

<pallas_src>
import functools

import jax
import jax.numpy as jnp
from jax.experimental import pallas as pl
from jax.experimental.pallas import tpu as pltpu


def _cluster_loss_kernel(x_ref, probs_ref, psum_ref, *,
                         B, HW, Bb, tile_hw, K,
                         needs_b_mask, needs_hw_mask):
    """One (batch-tile, spatial-tile) block.

    x_ref     : (Bb, K, tile_hw)  input dtype  inner products
    probs_ref : (Bb, K, tile_hw)  probs dtype  one-hot argmax over K
    psum_ref  : (1, 1, 1, 1)      f32          per-tile sum of selected values
    """
    x = x_ref[...]                                       # native dtype compute

    # argmax over the cluster axis K with first-occurrence tie-breaking
    # (matches torch.argmax / jnp.argmax).
    xmax = jnp.max(x, axis=1, keepdims=True)             # (Bb, 1, T)
    row = jax.lax.broadcasted_iota(jnp.int32, x.shape, 1)
    first_idx = jnp.min(jnp.where(x == xmax, row, K), axis=1, keepdims=True)
    probs_ref[...] = (row == first_idx).astype(probs_ref.dtype)

    # one_hot(argmax) . x along K is by construction the column max, so reuse
    # xmax for the loss; upcast only this (Bb, 1, T) slice to f32.
    xsel = xmax.astype(jnp.float32)

    # Mask out-of-range lanes / batches of the (unpadded-array) edge blocks.
    # These are static Python branches: zero cost when shapes divide evenly.
    if needs_hw_mask:
        lane = jax.lax.broadcasted_iota(jnp.int32, xsel.shape, 2)
        xsel = jnp.where(pl.program_id(1) * tile_hw + lane < HW, xsel, 0.0)
    if needs_b_mask:
        brow = jax.lax.broadcasted_iota(jnp.int32, xsel.shape, 0)
        xsel = jnp.where(pl.program_id(0) * Bb + brow < B, xsel, 0.0)

    s = jnp.sum(xsel, axis=2, keepdims=True)             # (Bb, 1, 1)
    s = jnp.sum(s, axis=0, keepdims=True)                # (1, 1, 1)
    psum_ref[0] = s


def cluster_loss(inner_products, *, probs_dtype=jnp.float32,
                 vmem_budget_bytes=16 * 1024 * 1024):
    """Pallas implementation of ClusterLoss.forward.

    inner_products: (B, K, H, W) array (NCHW, like PyTorch).
    Returns (cluster_loss scalar f32, cluster_probs (B, K, H, W) probs_dtype).
    """
    B, K, H, W = inner_products.shape
    HW = H * W
    N = B * HW

    # Free reshape: H, W are already the trailing axes (no transpose).
    x = inner_products.reshape(B, K, HW)

    # ---- Tile sizing: derived purely from a temporaries-aware VMEM budget ----
    # Per (K, lane, batch) element: double-buffered input block + double-
    # buffered probs block + ~4 words of in-kernel temporaries (row iota,
    # where-result, compare, casts). K rounds up to 8 sublanes in VMEM.
    in_bytes = jnp.dtype(inner_products.dtype).itemsize
    probs_bytes = jnp.dtype(probs_dtype).itemsize
    k_pad = pl.cdiv(K, 8) * 8
    per_lane_bytes = k_pad * (2 * in_bytes + 2 * probs_bytes + 16)
    max_lanes = max(128, vmem_budget_bytes // per_lane_bytes)

    hw_pad128 = pl.cdiv(HW, 128) * 128   # lane footprint of a full-HW tile
    if hw_pad128 <= max_lanes:
        # Whole spatial extent in one tile (block last dim == full array dim is
        # always legal). Fold batch into the block so each grid step moves
        # plenty of HBM traffic, but keep >= 2 grid steps for megacore (v7x).
        tile_hw = HW
        bb = max(1, min(B, max_lanes // hw_pad128))
        if B > 1:
            bb = min(bb, pl.cdiv(B, 2))
    else:
        tile_hw = (max_lanes // 128) * 128       # multiple of 128: legal block
        bb = 1
    n_hw = pl.cdiv(HW, tile_hw)
    n_b = pl.cdiv(B, bb)

    needs_hw_mask = (HW % tile_hw) != 0
    needs_b_mask = (B % bb) != 0

    kernel = functools.partial(
        _cluster_loss_kernel, B=B, HW=HW, Bb=bb, tile_hw=tile_hw, K=K,
        needs_b_mask=needs_b_mask, needs_hw_mask=needs_hw_mask)

    probs, psums = pl.pallas_call(
        kernel,
        out_shape=(
            jax.ShapeDtypeStruct((B, K, HW), probs_dtype),
            # 4-D with trailing (1, 1) dims so the block satisfies the (8,128)
            # rule by equaling the full array dims; the 4-byte store per step
            # is negligible traffic.
            jax.ShapeDtypeStruct((n_b, n_hw, 1, 1), jnp.float32),
        ),
        grid_spec=pltpu.PrefetchScalarGridSpec(
            num_scalar_prefetch=0,
            grid=(n_b, n_hw),
            in_specs=[pl.BlockSpec((bb, K, tile_hw), lambda b, j: (b, 0, j))],
            out_specs=(
                pl.BlockSpec((bb, K, tile_hw), lambda b, j: (b, 0, j)),
                pl.BlockSpec((1, 1, 1, 1), lambda b, j: (b, j, 0, 0)),
            ),
        ),
        compiler_params=pltpu.CompilerParams(
            dimension_semantics=("parallel", "parallel"),
            # 32 MiB: within v7x's 32 MiB scoped default / 64 MiB physical, and
            # deliberately above v5e's 16 MiB scoped default (128 MiB physical).
            vmem_limit_bytes=32 * 1024 * 1024,
        ),
    )(x)

    cluster_loss_val = -(jnp.sum(psums) / jnp.float32(N))
    cluster_probs = probs.reshape(B, K, H, W)
    return cluster_loss_val, cluster_probs


def _reference(inner_products):
    """Pure-JAX reference mirroring the PyTorch module (float32)."""
    x = inner_products.astype(jnp.float32)
    K = x.shape[1]
    amax = jnp.argmax(x, axis=1)                                  # (B, H, W)
    probs = jax.nn.one_hot(amax, K, dtype=jnp.float32)            # (B, H, W, K)
    probs = jnp.transpose(probs, (0, 3, 1, 2))                    # (B, K, H, W)
    loss = -(probs * x).sum(axis=1).mean()
    return loss, probs


if __name__ == "__main__":
    key = jax.random.PRNGKey(0)

    # 1) Main test: divisible spatial size, batch fold capped for >=2 steps.
    B, K, H, W = 2, 4, 16, 16
    inner_products = jax.random.normal(key, (B, K, H, W), dtype=jnp.float32)
    loss, probs = jax.block_until_ready(cluster_loss(inner_products))
    ref_loss, ref_probs = _reference(inner_products)
    assert jnp.allclose(loss, ref_loss, atol=1e-5), (loss, ref_loss)
    assert jnp.array_equal(probs, ref_probs)

    # 2) HW not a multiple of 128 -> single full-HW tile, no pad / no slice.
    x2 = jax.random.normal(jax.random.PRNGKey(1), (2, 4, 10, 10), jnp.float32)
    loss2, probs2 = jax.block_until_ready(cluster_loss(x2))
    ref_loss2, ref_probs2 = _reference(x2)
    assert jnp.allclose(loss2, ref_loss2, atol=1e-5), (loss2, ref_loss2)
    assert jnp.array_equal(probs2, ref_probs2)

    # 3) Force spatial tiling with a non-dividing tile (exercises the in-kernel
    #    lane mask + Pallas-masked edge-block probs writes).
    x3 = jax.random.normal(jax.random.PRNGKey(2), (1, 4, 48, 50), jnp.float32)
    loss3, probs3 = jax.block_until_ready(
        cluster_loss(x3, vmem_budget_bytes=128 * 1024))
    ref_loss3, ref_probs3 = _reference(x3)
    assert jnp.allclose(loss3, ref_loss3, atol=1e-5), (loss3, ref_loss3)
    assert jnp.array_equal(probs3, ref_probs3)

    # 4) Batch not divisible by the folded batch block (exercises batch mask).
    x4 = jax.random.normal(jax.random.PRNGKey(3), (3, 4, 8, 16), jnp.float32)
    loss4, probs4 = jax.block_until_ready(cluster_loss(x4))
    ref_loss4, ref_probs4 = _reference(x4)
    assert jnp.allclose(loss4, ref_loss4, atol=1e-5), (loss4, ref_loss4)
    assert jnp.array_equal(probs4, ref_probs4)

    print("KERNEL_OK")
</pallas_src>

<mosaic_0001>
module attributes {stable_mosaic.version = 11 : i64} {
  func.func @_cluster_loss_kernel(%arg0: i32, %arg1: i32, %arg2: memref<1x4x256xf32, #tpu.memory_space<vmem>>, %arg3: memref<1x4x256xf32, #tpu.memory_space<vmem>>, %arg4: memref<1x1x1x1xf32, #tpu.memory_space<vmem>>) attributes {dimension_semantics = [#tpu.dimension_semantics<parallel>, #tpu.dimension_semantics<parallel>], iteration_bounds = array<i64: 2, 1>, scalar_prefetch = 0 : i64, scratch_operands = 0 : i64, tpu.core_type = #tpu.core_type<tc>, window_params = [{transform_indices = @transform_0, window_bounds = array<i64: 1, 4, 256>}, {transform_indices = @transform_1, window_bounds = array<i64: 1, 4, 256>}, {transform_indices = @transform_2, window_bounds = array<i64: 1, 1, 1, 1>}]} {
    %c0 = arith.constant 0 : index
    %c0_0 = arith.constant 0 : index
    %c0_1 = arith.constant 0 : index
    %0 = vector.load %arg2[%c0, %c0_0, %c0_1] : memref<1x4x256xf32, #tpu.memory_space<vmem>>, vector<1x4x256xf32>
    %cst = arith.constant dense<0xFF800000> : vector<1x256xf32>
    %1 = vector.multi_reduction <maximumf>, %0, %cst [1] : vector<1x4x256xf32> to vector<1x256xf32>
    %2 = vector.shape_cast %1 : vector<1x256xf32> to vector<1x1x256xf32>
    %3 = tpu.iota {dimensions = array<i32: 1>} : vector<1x4x256xi32>
    %4 = vector.broadcast %2 : vector<1x1x256xf32> to vector<1x4x256xf32>
    %5 = arith.cmpf oeq, %0, %4 : vector<1x4x256xf32>
    %c4_i32 = arith.constant 4 : i32
    %6 = vector.broadcast %c4_i32 : i32 to vector<1x4x256xi32>
    %7 = arith.select %5, %3, %6 : vector<1x4x256xi1>, vector<1x4x256xi32>
    %cst_2 = arith.constant dense<2147483647> : vector<1x256xi32>
    %8 = vector.multi_reduction <minsi>, %7, %cst_2 [1] : vector<1x4x256xi32> to vector<1x256xi32>
    %9 = vector.shape_cast %8 : vector<1x256xi32> to vector<1x1x256xi32>
    %10 = vector.broadcast %9 : vector<1x1x256xi32> to vector<1x4x256xi32>
    %11 = arith.cmpi eq, %3, %10 : vector<1x4x256xi32>
    %12 = arith.extui %11 : vector<1x4x256xi1> to vector<1x4x256xi32>
    %13 = arith.sitofp %12 : vector<1x4x256xi32> to vector<1x4x256xf32>
    %c0_3 = arith.constant 0 : index
    %c0_4 = arith.constant 0 : index
    %c0_5 = arith.constant 0 : index
    %14 = vector.load %arg3[%c0_3, %c0_4, %c0_5] : memref<1x4x256xf32, #tpu.memory_space<vmem>>, vector<1x4x256xf32>
    tpu.vector_store %arg3[%c0_3, %c0_4, %c0_5], %13 {strides = array<i32>} : memref<1x4x256xf32, #tpu.memory_space<vmem>>, vector<1x4x256xf32>,
    %cst_6 = arith.constant dense<0.000000e+00> : vector<1x1xf32>
    %15 = vector.multi_reduction <add>, %2, %cst_6 [2] : vector<1x1x256xf32> to vector<1x1xf32>
    %16 = vector.shape_cast %15 : vector<1x1xf32> to vector<1x1x1xf32>
    %cst_7 = arith.constant dense<0.000000e+00> : vector<1x1xf32>
    %17 = vector.multi_reduction <add>, %16, %cst_7 [0] : vector<1x1x1xf32> to vector<1x1xf32>
    %18 = vector.shape_cast %17 : vector<1x1xf32> to vector<1x1x1xf32>
    %c0_8 = arith.constant 0 : index
    %c0_9 = arith.constant 0 : index
    %c0_10 = arith.constant 0 : index
    %c0_11 = arith.constant 0 : index
    %19 = vector.load %arg4[%c0_8, %c0_9, %c0_10, %c0_11] : memref<1x1x1x1xf32, #tpu.memory_space<vmem>>, vector<1x1x1x1xf32>
    %20 = vector.shape_cast %19 : vector<1x1x1x1xf32> to vector<1x1x1xf32>
    %21 = vector.shape_cast %18 : vector<1x1x1xf32> to vector<1x1x1x1xf32>
    tpu.vector_store %arg4[%c0_8, %c0_9, %c0_10, %c0_11], %21 {strides = array<i32>} : memref<1x1x1x1xf32, #tpu.memory_space<vmem>>, vector<1x1x1x1xf32>,
    return
  }
  func.func @transform_0(%arg0: i32, %arg1: i32) -> (i32, i32, i32) {
    %c0_i32 = arith.constant 0 : i32
    %c0_i32_0 = arith.constant 0 : i32
    return %arg0, %c0_i32, %arg1 : i32, i32, i32
  }
  func.func @transform_1(%arg0: i32, %arg1: i32) -> (i32, i32, i32) {
    %c0_i32 = arith.constant 0 : i32
    %c0_i32_0 = arith.constant 0 : i32
    return %arg0, %c0_i32, %arg1 : i32, i32, i32
  }
  func.func @transform_2(%arg0: i32, %arg1: i32) -> (i32, i32, i32, i32) {
    %c0_i32 = arith.constant 0 : i32
    %c0_i32_0 = arith.constant 0 : i32
    %c0_i32_1 = arith.constant 0 : i32
    return %arg0, %arg1, %c0_i32, %c0_i32_0 : i32, i32, i32, i32
  }
}

</mosaic_0001>

<llo_original>
// kernel: tpu_custom_call.1
$region0: #{tpu_custom_call.1}
  #allocation0 [shape = 'u32[]', space=smem, size = 0x4, offset = 0x4, fixed_abs, tag = 'smem constant byte address 0x4 - core index']
  #allocation1 [shape = 'u32[72,128]{1,0:T(1,128)}', space=vmem, size = 0x9000, scoped, tag = 'internal scratch']
  %s0 = inlined_call_operand.hbm [shape: f32[2,4,256], index: 0, kind: input, shape index: {}]
  %s1 = inlined_call_operand.hbm [shape: f32[2,4,256], index: 1, kind: output, shape index: {0}]
  %s2 = inlined_call_operand.vmem [shape: f32[2,1,1,1], index: 2, kind: output, shape index: {1}]
  %3 = xla_tuple %s1, %s2
  %s4 = sld [smem:[#allocation0]]
  $region49: #{tpu_custom_call.1} parent=0
    _
  %s6 = ssub.s32 1, %s4
  %s7 = scalar_select 0, %s6, %s4
  $region1: #{tpu_custom_call.1} parent=0
    #allocation2 [shape = 'u8[8192]{0}', space=vmem, size = 0x2000, scoped, tag = 'input window, operand 0']
    #allocation3 [shape = 's32[2]{0}', space=sflag, size = 0x8, scoped, tag = 'scoped memory for tpu_custom_call.1']
    #allocation4 [shape = 's32[2]{0}', space=sflag, size = 0x8, scoped, tag = 'scoped memory for tpu_custom_call.1']
    #allocation5 [shape = 'u8[8192]{0}', space=vmem, size = 0x2000, scoped, tag = 'output window, operand 0']
    %8 = vsyncpa [#allocation3], 0
    %s9 = scalar_lea.sflag [#allocation3], 1
    %10 = vsyncpa %s9, 0
    %11 = vsyncpa [#allocation4], 0
    %s12 = scalar_lea.sflag [#allocation4], 1
    %13 = vsyncpa %s12, 0
    loop: start=0, step=1, limit=4
    $region2: #{tpu_custom_call.1} parent=1 // loop_pre_header
      _
    $region3: #{tpu_custom_call.1} parent=1 // loop_header
      %s15 = sphi 0, %s19
      %p16 = scmp.ge.s32.totalorder %s15, 4
      %s22 = sphi 0, %s34
      %s23 = sphi 0, %s30
      %s24 = sphi 0, %s22
      %s25 = sphi 0, %s23
      %s26 = sphi 0, %s24
      %s27 = sphi 0, %s25
      %s39 = sphi 0, %s41
      %s42 = sphi 0, %s39
      %s43 = sphi 0, %s42
      %s59 = sphi 0, %s43
      %s67 = sphi 0, %s69
      %s70 = sphi 0, %s67
      %s71 = sphi 0, %s70
      %s87 = sphi 0, %s71
      %s95 = sphi 0, %s97
      %s98 = sphi 0, %s95
      %s99 = sphi 0, %s98
      %s115 = sphi 0, %s99
    $region4: #{tpu_custom_call.1} parent=1 // loop_header_branch
      %18 = sbr.rel (%p16) target = $region8
    $region5: #{tpu_custom_call.1} parent=1 // loop_body
      %s20 = ssub.s32 %s15, 1
      %s21 = ssub.s32 %s15, 2
      %s28 = sadd.s32 1, %s23
      %p29 = scmp.ge.s32.totalorder %s28, 1
      %s30 = scalar_select %p29, 0, %s28
      %s31 = sadd.s32 1, %s22
      %s32 = scalar_select %p29, %s31, %s22
      %p33 = scmp.ge.s32.totalorder %s32, 2
      %s34 = scalar_select %p33, 0, %s32
      %s35 = ssub.s32 %s22, %s34
      %s36 = ssub.s32 %s23, %s30
      %s37 = sor.u32 %s35, %s36
      %p38 = scmp.eq.s32.totalorder %s37, 0
      %s40 = sadd.s32 %s39, 1
      %s41 = scalar_select %p38, %s39, %s40
      %p44 = pneg %p38
      %p45 = scmp.eq.s32.totalorder %s15, 1
      %p46 = por %p44, %p45
      %p47 = scmp.ne.s32.totalorder %s39, %s42
      %p48 = scmp.eq.s32.totalorder %s15, 0
      %p49 = por %p47, %p48
      %p50 = scmp.ne.s32.totalorder %s39, %s42
      %p51 = scmp.eq.s32.totalorder %s20, 1
      %p52 = por %p50, %p51
      %p53 = scmp.ne.s32.totalorder %s42, %s43
      %p54 = scmp.eq.s32.totalorder %s20, 0
      %p55 = por %p53, %p54
      %p56 = scmp.ne.s32.totalorder %s42, %s43
      %p57 = scmp.eq.s32.totalorder %s21, 1
      %p58 = por %p56, %p57
      %p60 = scmp.ne.s32.totalorder %s43, %s59
      %p61 = scmp.eq.s32.totalorder %s21, 0
      %p62 = por %p60, %p61
      %s63 = ssub.s32 %s22, %s34
      %s64 = ssub.s32 %s23, %s30
      %s65 = sor.u32 %s63, %s64
      %p66 = scmp.eq.s32.totalorder %s65, 0
      %s68 = sadd.s32 %s67, 1
      %s69 = scalar_select %p66, %s67, %s68
      %p72 = pneg %p66
      %p73 = scmp.eq.s32.totalorder %s15, 1
      %p74 = por %p72, %p73
      %p75 = scmp.ne.s32.totalorder %s67, %s70
      %p76 = scmp.eq.s32.totalorder %s15, 0
      %p77 = por %p75, %p76
      %p78 = scmp.ne.s32.totalorder %s67, %s70
      %p79 = scmp.eq.s32.totalorder %s20, 1
      %p80 = por %p78, %p79
      %p81 = scmp.ne.s32.totalorder %s70, %s71
      %p82 = scmp.eq.s32.totalorder %s20, 0
      %p83 = por %p81, %p82
      %p84 = scmp.ne.s32.totalorder %s70, %s71
      %p85 = scmp.eq.s32.totalorder %s21, 1
      %p86 = por %p84, %p85
      %p88 = scmp.ne.s32.totalorder %s71, %s87
      %p89 = scmp.eq.s32.totalorder %s21, 0
      %p90 = por %p88, %p89
      %s91 = ssub.s32 %s22, %s34
      %s92 = ssub.s32 %s23, %s30
      %s93 = sor.u32 %s91, %s92
      %p94 = scmp.eq.s32.totalorder %s93, 0
      %s96 = sadd.s32 %s95, 1
      %s97 = scalar_select %p94, %s95, %s96
      %p100 = pneg %p94
      %p101 = scmp.eq.s32.totalorder %s15, 1
      %p102 = por %p100, %p101
      %p103 = scmp.ne.s32.totalorder %s95, %s98
      %p104 = scmp.eq.s32.totalorder %s15, 0
      %p105 = por %p103, %p104
      %p106 = scmp.ne.s32.totalorder %s95, %s98
      %p107 = scmp.eq.s32.totalorder %s20, 1
      %p108 = por %p106, %p107
      %p109 = scmp.ne.s32.totalorder %s98, %s99
      %p110 = scmp.eq.s32.totalorder %s20, 0
      %p111 = por %p109, %p110
      %p112 = scmp.ne.s32.totalorder %s98, %s99
      %p113 = scmp.eq.s32.totalorder %s21, 1
      %p114 = por %p112, %p113
      %p116 = scmp.ne.s32.totalorder %s99, %s115
      %p117 = scmp.eq.s32.totalorder %s21, 0
      %p118 = por %p116, %p117
      %p119 = scmp.le.s32.totalorder 1, %s15
      %p120 = scmp.lt.s32.totalorder %s15, 3
      %p121 = pnand %p119, %p120
      %p122 = pneg %p121
      // Predicated region
      $region9: #{tpu_custom_call.1} parent=5 // pred_check
        _
      $region10: #{tpu_custom_call.1} parent=5 // pred_check_branch
        %124 = sbr.rel (%p121) target = $region12
      $region11: #{tpu_custom_call.1} parent=5 // pred_region
        %s125 = ssub.s32 %s15, 1
      $region12: #{tpu_custom_call.1} parent=5 // pred_fallthru
        _
      %p126 = scmp.lt.s32.totalorder %s15, 2
      // Predicated region
      $region13: #{tpu_custom_call.1} parent=5 // pred_check
        %p127 = pneg %p126
      $region14: #{tpu_custom_call.1} parent=5 // pred_check_branch
        %129 = sbr.rel (%p127) target = $region16
      $region15: #{tpu_custom_call.1} parent=5 // pred_region
        // Predicated region
        $region17: #{tpu_custom_call.1} parent=15 // pred_check
          %p130 = pneg %p49
        $region18: #{tpu_custom_call.1} parent=15 // pred_check_branch
          %132 = sbr.rel (%p130) target = $region20
        $region19: #{tpu_custom_call.1} parent=15 // pred_region
          %s133 = sand.u32 %s39, 1
          %s134 = scalar_lea.sflag [#allocation3], %s133
          %s135 = sand.u32 %s39, 1
          %s136 = smul.addr %s135, 8
          %s137 = scalar_lea.vmem [#allocation2], %s136
          %s138 = smul.u32 2, %s23
          %140 = vsyncadd %s134, 0
          %s141 = smul.addr %s22, 2
          %s142 = sadd.s32 %s138, %s141
          %s143 = smul.addr %s142, 4
          %s144 = scalar_lea.hbm %s0, %s143
          %s146 = sshll.u32 %s144, 4
          %s147 = int_to_ptr.hbm [resolvable:$true] %s146
          %s148 = sshll.u32 %s137, 4
          %s149 = int_to_ptr.vmem [resolvable:$true] %s148
          %151 = dma.hbm_to_vmem [thread:$0]  %s147, 128, %s149, %s134
        $region20: #{tpu_custom_call.1} parent=15 // pred_fallthru
          _
      $region16: #{tpu_custom_call.1} parent=5 // pred_fallthru
        _
      %p152 = scmp.le.s32.totalorder 1, %s15
      %p153 = scmp.lt.s32.totalorder %s15, 3
      %p154 = pnand %p152, %p153
      %p155 = pneg %p154
      // Predicated region
      $region21: #{tpu_custom_call.1} parent=5 // pred_check
        _
      $region22: #{tpu_custom_call.1} parent=5 // pred_check_branch
        %157 = sbr.rel (%p154) target = $region24
      $region23: #{tpu_custom_call.1} parent=5 // pred_region
        %s158 = ssub.s32 %s15, 1
        %s159 = sand.u32 %s42, 1
        %s160 = scalar_lea.sflag [#allocation3], %s159
        %s161 = sand.u32 %s42, 1
        %s162 = smul.addr %s161, 8
        %s163 = scalar_lea.vmem [#allocation2], %s162
        // Predicated region
        $region25: #{tpu_custom_call.1} parent=23 // pred_check
          %p164 = pneg %p55
        $region26: #{tpu_custom_call.1} parent=23 // pred_check_branch
          %166 = sbr.rel (%p164) target = $region28
        $region27: #{tpu_custom_call.1} parent=23 // pred_region
          %168 = dma.done %s160, 128
        $region28: #{tpu_custom_call.1} parent=23 // pred_fallthru
          _
        %s169 = sand.u32 %s42, 1
        %s170 = scalar_lea.sflag [#allocation3], %s169
        %s171 = sand.u32 %s42, 1
        %s172 = smul.addr %s171, 8
        %s173 = scalar_lea.vmem [#allocation2], %s172
        %p174 = pneg %p55
        %p175 = pneg %p52
        %p176 = pneg %p83
        %p177 = pneg %p80
        %s178 = sand.u32 %s70, 1
        %s179 = scalar_lea.sflag [#allocation4], %s178
        %s180 = sand.u32 %s70, 1
        %s181 = smul.addr %s180, 8
        %s182 = scalar_lea.vmem [#allocation5], %s181
        %p183 = pneg %p111
        %p184 = pneg %p108
        %p185 = scmp.lt.s32.totalorder %s24, 1
        %s186 = scalar_select %p185, %s24, 1
        %p187 = scmp.lt.s32.totalorder %s25, 0
        %s188 = scalar_select %p187, %s25, 0
        %s189 = sadd.s32 %s188, %s186
        %s190 = scalar_lea.vmem %s2, %s189
        %s191 = smul.u32 2, %s25
        %s192 = smul.u32 2, %s25
        %p193 = scmp.lt.s32.totalorder %s24, 1
        %s194 = scalar_select %p193, %s24, 1
        %p195 = scmp.lt.s32.totalorder %s25, 0
        %s196 = scalar_select %p195, %s25, 0
        %s197 = sadd.s32 %s196, %s194
        %s198 = scalar_lea.vmem %s2, %s197
        %v199 = vld [vmem:[%s163] sm:$0xff]
        %201 = vst [vmem:[#allocation1] ss:$2 sm:$0xff] %v199
        %v202 = vld.sshfl [vmem:[#allocation1] sm:$0xff pattern:$0x75316420]
        %v203 = vld.sshfl [vmem:[#allocation1 + $0x8] sm:$0xff pattern:$0x75316420]
        %vm206 = vcmask 1043456
        %v207 = vsel %vm206, %v202, -inf
        %v208 = vrot.slane %v207, 4
        %v209 = vmax.f32 %v207, %v208
        %v210 = vrot.slane %v209, 2
        %v211 = vmax.f32 %v209, %v210
        %v212 = vrot.slane %v211, 1
        %v213 = vmax.f32 %v211, %v212
        %v214 = vsel %vm206, %v203, -inf
        %v215 = vrot.slane %v214, 4
        %v216 = vmax.f32 %v214, %v215
        %v217 = vrot.slane %v216, 2
        %v218 = vmax.f32 %v216, %v217
        %v219 = vrot.slane %v218, 1
        %v220 = vmax.f32 %v218, %v219
        %v221 = vlaneseq
        %v222 = vshrl.u32 %v221, 7
        %v225 = vrot.slane %v220, 4
        %v226 = vsel %vm206, %v213, %v225
        %vm228 = vcmp.eq.f32.partialorder %v199, %v226
        %v230 = vunpack.c.l.s4 839922192
        %v231 = vunpack.c.0.s8 %v230
        %v232 = vperm.slane %v222, %v231
        %v233 = vsel %vm228, %v232, 4
        %234 = vst [vmem:[#allocation1] ss:$2 sm:$0xff] %v233
        %v235 = vld.sshfl [vmem:[#allocation1] sm:$0xff pattern:$0x75316420]
        %v236 = vld.sshfl [vmem:[#allocation1 + $0x8] sm:$0xff pattern:$0x75316420]
        %v237 = vsel %vm206, %v235, 2147483647
        %v238 = vrot.slane %v237, 4
        %vm239 = vcmp.lt.s32.totalorder %v237, %v238
        %v240 = vsel %vm239, %v237, %v238
        %v241 = vrot.slane %v240, 2
        %vm242 = vcmp.lt.s32.totalorder %v240, %v241
        %v243 = vsel %vm242, %v240, %v241
        %v244 = vrot.slane %v243, 1
        %vm245 = vcmp.lt.s32.totalorder %v243, %v244
        %v246 = vsel %vm245, %v243, %v244
        %v247 = vsel %vm206, %v236, 2147483647
        %v248 = vrot.slane %v247, 4
        %vm249 = vcmp.lt.s32.totalorder %v247, %v248
        %v250 = vsel %vm249, %v247, %v248
        %v251 = vrot.slane %v250, 2
        %vm252 = vcmp.lt.s32.totalorder %v250, %v251
        %v253 = vsel %vm252, %v250, %v251
        %v254 = vrot.slane %v253, 1
        %vm255 = vcmp.lt.s32.totalorder %v253, %v254
        %v256 = vsel %vm255, %v253, %v254
        %vm257 = vcmp.eq.s32.totalorder %v222, %v246
        %vm258 = vcmp.eq.s32.totalorder %v222, %v256
        %v259 = vsel %vm257, 1, 0
        %v260 = vsel %vm258, 1, 0
        %v261 = vcvt.s32.f32 %v259
        %v262 = vcvt.s32.f32 %v260
        %v265 = vrot.slane %v262, 4
        %v266 = vsel %vm206, %v261, %v265
        %268 = vst [vmem:[%s182] sm:$0xff] %v266
        %v269 = vadd.f32 %v213, %v220
        %270 = vadd.xlane.f32.xlu0 %v269
        %v271 = vpop.xlane.xlu0 %270
        %v272 = vadd.f32 %v271, 0.0
        %vm273 = vcmask 0
        %274 = vst.msk [vmem:[%s198] sm:$0x1] %vm273, %v272
        %s275 = sand.u32 %s70, 1
        %s276 = scalar_lea.sflag [#allocation4], %s275
        %s277 = sand.u32 %s70, 1
        %s278 = smul.addr %s277, 8
        %s279 = scalar_lea.vmem [#allocation5], %s278
        %p280 = scmp.lt.s32.totalorder %s24, 1
        %s281 = scalar_select %p280, %s24, 1
        %p282 = scmp.lt.s32.totalorder %s25, 0
        %s283 = scalar_select %p282, %s25, 0
        %s284 = sadd.s32 %s283, %s281
        %s285 = scalar_lea.vmem %s2, %s284
        // Predicated region
        $region29: #{tpu_custom_call.1} parent=23 // pred_check
          %p286 = pneg %p80
        $region30: #{tpu_custom_call.1} parent=23 // pred_check_branch
          %288 = sbr.rel (%p286) target = $region32
        $region31: #{tpu_custom_call.1} parent=23 // pred_region
          %s289 = smul.u32 2, %s25
          %291 = vsyncadd %s276, 0
          %s292 = smul.addr %s24, 2
          %s293 = sadd.s32 %s289, %s292
          %s294 = smul.addr %s293, 4
          %s295 = scalar_lea.hbm %s1, %s294
          %s297 = sshll.u32 %s279, 4
          %s298 = int_to_ptr.vmem [resolvable:$true] %s297
          %s299 = sshll.u32 %s295, 4
          %s300 = int_to_ptr.hbm [resolvable:$true] %s299
          %302 = dma.vmem_to_hbm [thread:$0]  %s298, 128, %s300, %s276
        $region32: #{tpu_custom_call.1} parent=23 // pred_fallthru
          _
        // Predicated region
        $region33: #{tpu_custom_call.1} parent=23 // pred_check
          %p303 = pneg %p108
        $region34: #{tpu_custom_call.1} parent=23 // pred_check_branch
          %305 = sbr.rel (%p303) target = $region36
        $region35: #{tpu_custom_call.1} parent=23 // pred_region
          _
        $region36: #{tpu_custom_call.1} parent=23 // pred_fallthru
          _
      $region24: #{tpu_custom_call.1} parent=5 // pred_fallthru
        _
      %p306 = scmp.le.s32.totalorder 2, %s15
      // Predicated region
      $region37: #{tpu_custom_call.1} parent=5 // pred_check
        %p307 = pneg %p306
      $region38: #{tpu_custom_call.1} parent=5 // pred_check_branch
        %309 = sbr.rel (%p307) target = $region40
      $region39: #{tpu_custom_call.1} parent=5 // pred_region
        %s310 = ssub.s32 %s15, 2
        // Predicated region
        $region41: #{tpu_custom_call.1} parent=39 // pred_check
          %p311 = pneg %p86
        $region42: #{tpu_custom_call.1} parent=39 // pred_check_branch
          %313 = sbr.rel (%p311) target = $region44
        $region43: #{tpu_custom_call.1} parent=39 // pred_region
          %s314 = sand.u32 %s71, 1
          %s315 = scalar_lea.sflag [#allocation4], %s314
          %s316 = sand.u32 %s71, 1
          %s317 = smul.addr %s316, 8
          %s318 = scalar_lea.vmem [#allocation5], %s317
          %320 = dma.done %s315, 128
        $region44: #{tpu_custom_call.1} parent=39 // pred_fallthru
          _
        // Predicated region
        $region45: #{tpu_custom_call.1} parent=39 // pred_check
          %p321 = pneg %p114
        $region46: #{tpu_custom_call.1} parent=39 // pred_check_branch
          %323 = sbr.rel (%p321) target = $region48
        $region47: #{tpu_custom_call.1} parent=39 // pred_region
          %p324 = scmp.lt.s32.totalorder %s26, 1
          %s325 = scalar_select %p324, %s26, 1
          %p326 = scmp.lt.s32.totalorder %s27, 0
          %s327 = scalar_select %p326, %s27, 0
          %s328 = sadd.s32 %s327, %s325
          %s329 = scalar_lea.vmem %s2, %s328
        $region48: #{tpu_custom_call.1} parent=39 // pred_fallthru
          _
      $region40: #{tpu_custom_call.1} parent=5 // pred_fallthru
        _
    $region6: #{tpu_custom_call.1} parent=1 // loop_footer
      %s19 = sadd.s32 1, %s15
    $region7: #{tpu_custom_call.1} parent=1 // loop_footer_branch
      %14 = sbr.rel target = $region3
    $region8: #{tpu_custom_call.1} parent=1 // loop_exit
      _
    %330 = vsyncpa [#allocation3], 1
    %s331 = scalar_lea.sflag [#allocation3], 1
    %332 = vsyncpa %s331, 1
    %333 = vsyncpa [#allocation4], 1
    %s334 = scalar_lea.sflag [#allocation4], 1
    %335 = vsyncpa %s334, 1

</llo_original>
